<compile_context>
chip_gen: v5e
topology: v5e:2x2
jax: 0.10.0
libtpu: 0.0.40
codegen_flags: <defaults>
</compile_context>

<pallas_src>
import numpy as np
import jax
import jax.numpy as jnp
from jax.experimental import pallas as pl
from jax.experimental.pallas import tpu as pltpu

_SUBLANE = 8    # sublane width (second-to-last dim alignment)


def _round_up(x, m):
    return ((x + m - 1) // m) * m


# ----------------------------------------------------------------------------
# Kernel: one batch tile through the full 3-layer MLP.
#   x:  (TB, D_IN)    w1: (D_IN, H1)  b1: (1, H1)
#   w2: (H1, H2)      b2: (1, H2)
#   w3: (H2, D_OUT)   b3: (1, D_OUT)  out: (TB, D_OUT)
# Weights/biases are resident (constant index_map); only x/out blocks stream.
# ----------------------------------------------------------------------------
def costate_mlp_kernel(x_ref,
                       w1_ref, b1_ref,
                       w2_ref, b2_ref,
                       w3_ref, b3_ref,
                       o_ref):
    x = x_ref[...]

    h = jnp.dot(x, w1_ref[...], preferred_element_type=jnp.float32) + b1_ref[...]
    h = jnp.maximum(h, 0.0)                                    # hidden activation: relu

    h = jnp.dot(h, w2_ref[...], preferred_element_type=jnp.float32) + b2_ref[...]
    h = jnp.maximum(h, 0.0)                                    # hidden activation: relu

    o = jnp.dot(h, w3_ref[...], preferred_element_type=jnp.float32) + b3_ref[...]
    o_ref[...] = o.astype(o_ref.dtype)                         # output activation: identity


def costate_forward(obs, params, *, tb_max=4096):
    """obs: [B, obs_dim] float32. params: list of (W[in, out], b[1, out])."""
    (w1, b1), (w2, b2), (w3, b3) = params
    B, obs_dim = obs.shape
    d_in, h1 = w1.shape
    h2 = w2.shape[1]
    d_out = w3.shape[1]
    assert d_in == obs_dim and d_out == obs_dim  # Costate: in == out == obs_dim

    # Batch tile: multiple of 8 sublanes.  Keep >=4 grid steps for large B
    # (v7x megacore sharding of the "parallel" axis) while capping the streamed
    # block VMEM footprint (tb * 128 lanes * 4 B per buffer, 2 arrays x 2 bufs).
    tb = min(tb_max, max(_SUBLANE, _round_up(pl.cdiv(B, 4), _SUBLANE)))
    grid = (pl.cdiv(B, tb),)

    b1r = b1.reshape(1, h1)
    b2r = b2.reshape(1, h2)
    b3r = b3.reshape(1, d_out)

    flops = 2 * B * (d_in * h1 + h1 * h2 + h2 * d_out)
    bytes_accessed = 4 * (obs.size + w1.size + b1r.size + w2.size
                          + b2r.size + w3.size + b3r.size + B * d_out)

    v = pl.pallas_call(
        costate_mlp_kernel,
        out_shape=jax.ShapeDtypeStruct((B, d_out), obs.dtype),
        grid=grid,
        in_specs=[
            pl.BlockSpec((tb, d_in), lambda i: (i, 0)),     # obs: streamed per tile
            pl.BlockSpec((d_in, h1), lambda i: (0, 0)),     # weights/biases: resident
            pl.BlockSpec((1, h1), lambda i: (0, 0)),
            pl.BlockSpec((h1, h2), lambda i: (0, 0)),
            pl.BlockSpec((1, h2), lambda i: (0, 0)),
            pl.BlockSpec((h2, d_out), lambda i: (0, 0)),
            pl.BlockSpec((1, d_out), lambda i: (0, 0)),
        ],
        out_specs=pl.BlockSpec((tb, d_out), lambda i: (i, 0)),
        compiler_params=pltpu.CompilerParams(
            dimension_semantics=("parallel",)),
        cost_estimate=pl.CostEstimate(flops=flops, transcendentals=0,
                                      bytes_accessed=bytes_accessed),
    )(obs, w1, b1r, w2, b2r, w3, b3r)

    # torch.squeeze(v, -1): only squeezes if the last dim is 1
    if v.shape[-1] == 1:
        v = jnp.squeeze(v, -1)
    return v


# ----------------------------------------------------------------------------
# Deterministic parameter construction matching init_weights():
#   Linear.weight ~ U(-w_bound, w_bound), w_bound = sqrt(6/(fan_in+fan_out))
#   Linear.bias   = 0
# Weights are stored as [in, out] (transpose of PyTorch's [out, in]).
# ----------------------------------------------------------------------------
def make_params(key, sizes):
    params = []
    for j in range(len(sizes) - 1):
        fan_in, fan_out = sizes[j], sizes[j + 1]
        w_bound = np.sqrt(6.0 / (fan_in + fan_out))
        key, sub = jax.random.split(key)
        w = jax.random.uniform(sub, (fan_in, fan_out), jnp.float32,
                               minval=-w_bound, maxval=w_bound)
        b = jnp.zeros((1, fan_out), jnp.float32)
        params.append((w, b))
    return params


def _ref_forward(obs, params):
    (w1, b1), (w2, b2), (w3, b3) = params
    h = jnp.maximum(obs @ w1 + b1, 0.0)
    h = jnp.maximum(h @ w2 + b2, 0.0)
    return h @ w3 + b3


if __name__ == "__main__":
    key = jax.random.PRNGKey(0)

    # Small shapes consistent with the module: obs_dim=6, hidden_sizes=(32, 32)
    obs_dim = 6
    hidden_sizes = (32, 32)
    sizes = [obs_dim] + list(hidden_sizes) + [obs_dim]

    key, k_params = jax.random.split(key)
    params = make_params(k_params, sizes)

    # Case 1: tiny batch (single grid step)
    key, k_obs = jax.random.split(key)
    obs = jax.random.normal(k_obs, (8, obs_dim), jnp.float32)
    out = costate_forward(obs, params)
    jax.block_until_ready(out)
    assert out.shape == (8, obs_dim), out.shape
    assert out.dtype == jnp.float32
    np.testing.assert_allclose(np.asarray(out), np.asarray(_ref_forward(obs, params)),
                               rtol=1e-5, atol=1e-5)

    # Case 2: batch not a multiple of the tile -> multi-step grid + masked
    # partial trailing block (100 rows, tb=32 -> 4 steps, last step 4 rows)
    key, k_obs2 = jax.random.split(key)
    obs2 = jax.random.normal(k_obs2, (100, obs_dim), jnp.float32)
    out2 = costate_forward(obs2, params, tb_max=64)
    jax.block_until_ready(out2)
    assert out2.shape == (100, obs_dim), out2.shape
    np.testing.assert_allclose(np.asarray(out2), np.asarray(_ref_forward(obs2, params)),
                               rtol=1e-5, atol=1e-5)

    print("KERNEL_OK")
</pallas_src>

<mosaic_0001>
module attributes {stable_mosaic.version = 11 : i64} {
  func.func @costate_mlp_kernel(%arg0: i32, %arg1: memref<8x6xf32, #tpu.memory_space<vmem>>, %arg2: memref<6x32xf32, #tpu.memory_space<vmem>>, %arg3: memref<1x32xf32, #tpu.memory_space<vmem>>, %arg4: memref<32x32xf32, #tpu.memory_space<vmem>>, %arg5: memref<1x32xf32, #tpu.memory_space<vmem>>, %arg6: memref<32x6xf32, #tpu.memory_space<vmem>>, %arg7: memref<1x6xf32, #tpu.memory_space<vmem>>, %arg8: memref<8x6xf32, #tpu.memory_space<vmem>>) attributes {dimension_semantics = [#tpu.dimension_semantics<parallel>], iteration_bounds = array<i64: 1>, scalar_prefetch = 0 : i64, scratch_operands = 0 : i64, tpu.core_type = #tpu.core_type<tc>, window_params = [{transform_indices = @transform_0, window_bounds = array<i64: 8, 6>}, {pipeline_mode = #tpu.pipeline_mode<synchronous>, transform_indices = @transform_1, window_bounds = array<i64: 6, 32>}, {pipeline_mode = #tpu.pipeline_mode<synchronous>, transform_indices = @transform_2, window_bounds = array<i64: 1, 32>}, {pipeline_mode = #tpu.pipeline_mode<synchronous>, transform_indices = @transform_3, window_bounds = array<i64: 32, 32>}, {pipeline_mode = #tpu.pipeline_mode<synchronous>, transform_indices = @transform_4, window_bounds = array<i64: 1, 32>}, {pipeline_mode = #tpu.pipeline_mode<synchronous>, transform_indices = @transform_5, window_bounds = array<i64: 32, 6>}, {pipeline_mode = #tpu.pipeline_mode<synchronous>, transform_indices = @transform_6, window_bounds = array<i64: 1, 6>}, {transform_indices = @transform_7, window_bounds = array<i64: 8, 6>}]} {
    %c0 = arith.constant 0 : index
    %c0_0 = arith.constant 0 : index
    %0 = vector.load %arg1[%c0, %c0_0] : memref<8x6xf32, #tpu.memory_space<vmem>>, vector<8x6xf32>
    %c0_1 = arith.constant 0 : index
    %c0_2 = arith.constant 0 : index
    %1 = vector.load %arg2[%c0_1, %c0_2] : memref<6x32xf32, #tpu.memory_space<vmem>>, vector<6x32xf32>
    %cst = arith.constant dense<0.000000e+00> : vector<8x32xf32>
    %2 = tpu.matmul %0, %1, %cst {dimension_numbers = #tpu.dot_dimension_numbers<[1], [0], [0], [1], [0, 0, 1, 1], [], []>} : vector<8x6xf32>, vector<6x32xf32>, vector<8x32xf32> -> vector<8x32xf32>
    %c0_3 = arith.constant 0 : index
    %c0_4 = arith.constant 0 : index
    %3 = vector.load %arg3[%c0_3, %c0_4] : memref<1x32xf32, #tpu.memory_space<vmem>>, vector<1x32xf32>
    %4 = vector.broadcast %3 : vector<1x32xf32> to vector<8x32xf32>
    %5 = arith.addf %2, %4 : vector<8x32xf32>
    %cst_5 = arith.constant 0.000000e+00 : f32
    %6 = vector.broadcast %cst_5 : f32 to vector<8x32xf32>
    %7 = arith.maximumf %5, %6 : vector<8x32xf32>
    %c0_6 = arith.constant 0 : index
    %c0_7 = arith.constant 0 : index
    %8 = vector.load %arg4[%c0_6, %c0_7] : memref<32x32xf32, #tpu.memory_space<vmem>>, vector<32x32xf32>
    %cst_8 = arith.constant dense<0.000000e+00> : vector<8x32xf32>
    %9 = tpu.matmul %7, %8, %cst_8 {dimension_numbers = #tpu.dot_dimension_numbers<[1], [0], [0], [1], [0, 0, 1, 1], [], []>} : vector<8x32xf32>, vector<32x32xf32>, vector<8x32xf32> -> vector<8x32xf32>
    %c0_9 = arith.constant 0 : index
    %c0_10 = arith.constant 0 : index
    %10 = vector.load %arg5[%c0_9, %c0_10] : memref<1x32xf32, #tpu.memory_space<vmem>>, vector<1x32xf32>
    %11 = vector.broadcast %10 : vector<1x32xf32> to vector<8x32xf32>
    %12 = arith.addf %9, %11 : vector<8x32xf32>
    %cst_11 = arith.constant 0.000000e+00 : f32
    %13 = vector.broadcast %cst_11 : f32 to vector<8x32xf32>
    %14 = arith.maximumf %12, %13 : vector<8x32xf32>
    %c0_12 = arith.constant 0 : index
    %c0_13 = arith.constant 0 : index
    %15 = vector.load %arg6[%c0_12, %c0_13] : memref<32x6xf32, #tpu.memory_space<vmem>>, vector<32x6xf32>
    %cst_14 = arith.constant dense<0.000000e+00> : vector<8x6xf32>
    %16 = tpu.matmul %14, %15, %cst_14 {dimension_numbers = #tpu.dot_dimension_numbers<[1], [0], [0], [1], [0, 0, 1, 1], [], []>} : vector<8x32xf32>, vector<32x6xf32>, vector<8x6xf32> -> vector<8x6xf32>
    %c0_15 = arith.constant 0 : index
    %c0_16 = arith.constant 0 : index
    %17 = vector.load %arg7[%c0_15, %c0_16] : memref<1x6xf32, #tpu.memory_space<vmem>>, vector<1x6xf32>
    %18 = vector.broadcast %17 : vector<1x6xf32> to vector<8x6xf32>
    %19 = arith.addf %16, %18 : vector<8x6xf32>
    %c0_17 = arith.constant 0 : index
    %c0_18 = arith.constant 0 : index
    %20 = vector.load %arg8[%c0_17, %c0_18] : memref<8x6xf32, #tpu.memory_space<vmem>>, vector<8x6xf32>
    tpu.vector_store %arg8[%c0_17, %c0_18], %19 {strides = array<i32>} : memref<8x6xf32, #tpu.memory_space<vmem>>, vector<8x6xf32>,
    return
  }
  func.func @transform_0(%arg0: i32) -> (i32, i32) {
    %c0_i32 = arith.constant 0 : i32
    %c0_i32_0 = arith.constant 0 : i32
    return %arg0, %c0_i32 : i32, i32
  }
  func.func @transform_1(%arg0: i32) -> (i32, i32) {
    %c0_i32 = arith.constant 0 : i32
    %c0_i32_0 = arith.constant 0 : i32
    %c0_i32_1 = arith.constant 0 : i32
    return %c0_i32, %c0_i32_0 : i32, i32
  }
  func.func @transform_2(%arg0: i32) -> (i32, i32) {
    %c0_i32 = arith.constant 0 : i32
    %c0_i32_0 = arith.constant 0 : i32
    %c0_i32_1 = arith.constant 0 : i32
    return %c0_i32, %c0_i32_0 : i32, i32
  }
  func.func @transform_3(%arg0: i32) -> (i32, i32) {
    %c0_i32 = arith.constant 0 : i32
    %c0_i32_0 = arith.constant 0 : i32
    %c0_i32_1 = arith.constant 0 : i32
    return %c0_i32, %c0_i32_0 : i32, i32
  }
  func.func @transform_4(%arg0: i32) -> (i32, i32) {
    %c0_i32 = arith.constant 0 : i32
    %c0_i32_0 = arith.constant 0 : i32
    %c0_i32_1 = arith.constant 0 : i32
    return %c0_i32, %c0_i32_0 : i32, i32
  }
  func.func @transform_5(%arg0: i32) -> (i32, i32) {
    %c0_i32 = arith.constant 0 : i32
    %c0_i32_0 = arith.constant 0 : i32
    %c0_i32_1 = arith.constant 0 : i32
    return %c0_i32, %c0_i32_0 : i32, i32
  }
  func.func @transform_6(%arg0: i32) -> (i32, i32) {
    %c0_i32 = arith.constant 0 : i32
    %c0_i32_0 = arith.constant 0 : i32
    %c0_i32_1 = arith.constant 0 : i32
    return %c0_i32, %c0_i32_0 : i32, i32
  }
  func.func @transform_7(%arg0: i32) -> (i32, i32) {
    %c0_i32 = arith.constant 0 : i32
    %c0_i32_0 = arith.constant 0 : i32
    return %arg0, %c0_i32 : i32, i32
  }
}

</mosaic_0001>

<llo_original>
// kernel: tpu_custom_call.1
$region0: #{tpu_custom_call.1}
  #allocation0 [shape = 'u32[]', space=smem, size = 0x4, offset = 0x4, fixed_abs, tag = 'smem constant byte address 0x4 - core index']
  #allocation1 [shape = 'u32[72,128]{1,0:T(1,128)}', space=vmem, size = 0x9000, scoped, tag = 'internal scratch']
  %s0 = inlined_call_operand.vmem [shape: f32[8,6], index: 0, kind: input, shape index: {}]
  %s1 = inlined_call_operand.hbm [shape: f32[6,32], index: 1, kind: input, shape index: {}]
  %s2 = inlined_call_operand.vmem [shape: f32[1,32], index: 2, kind: input, shape index: {}]
  %s3 = inlined_call_operand.vmem [shape: f32[32,32], index: 3, kind: input, shape index: {}]
  %s4 = inlined_call_operand.vmem [shape: f32[1,32], index: 4, kind: input, shape index: {}]
  %s5 = inlined_call_operand.vmem [shape: f32[32,6], index: 5, kind: input, shape index: {}]
  %s6 = inlined_call_operand.vmem [shape: f32[1,6], index: 6, kind: input, shape index: {}]
  %s7 = inlined_call_operand.hbm [shape: f32[8,6], index: 7, kind: output, shape index: {}]
  %s8 = sld [smem:[#allocation0]]
  $region42: #{tpu_custom_call.1} parent=0
    _
  %s10 = ssub.s32 1, %s8
  %s11 = scalar_select 0, %s10, %s8
  $region1: #{tpu_custom_call.1} parent=0
    #allocation2 [shape = 'u8[4096]{0}', space=vmem, size = 0x1000, scoped, tag = 'input window, operand 1, single buffered']
    #allocation3 [shape = 's32[1]{0}', space=sflag, size = 0x4, scoped, tag = 'scoped memory for tpu_custom_call.1']
    #allocation4 [shape = 's32[1]{0}', space=sflag, size = 0x4, scoped, tag = 'scoped memory for tpu_custom_call.1']
    #allocation5 [shape = 'u8[4096]{0}', space=vmem, size = 0x1000, scoped, tag = 'output window, operand 0, single buffered']
    %12 = vsyncpa [#allocation3], 0
    %13 = vsyncpa [#allocation4], 0
    // Predicated region
    $region2: #{tpu_custom_call.1} parent=1 // pred_check
      _
    $region3: #{tpu_custom_call.1} parent=1 // pred_check_branch
      %15 = sbr.rel (0) target = $region5
    $region4: #{tpu_custom_call.1} parent=1 // pred_region
      _
    $region5: #{tpu_custom_call.1} parent=1 // pred_fallthru
      _
    // Predicated region
    $region6: #{tpu_custom_call.1} parent=1 // pred_check
      _
    $region7: #{tpu_custom_call.1} parent=1 // pred_check_branch
      %17 = sbr.rel (0) target = $region9
    $region8: #{tpu_custom_call.1} parent=1 // pred_region
      %19 = vsyncadd [#allocation3], 0
      %s21 = sshll.u32 %s1, 4
      %s22 = int_to_ptr.hbm [resolvable:$true] %s21
      %s23 = sshll.u32 [#allocation2], 4
      %s24 = int_to_ptr.vmem [resolvable:$true] %s23
      %26 = dma.hbm_to_vmem [thread:$0]  %s22, 128, %s24, [#allocation3]
    $region9: #{tpu_custom_call.1} parent=1 // pred_fallthru
      _
    // Predicated region
    $region10: #{tpu_custom_call.1} parent=1 // pred_check
      _
    $region11: #{tpu_custom_call.1} parent=1 // pred_check_branch
      %28 = sbr.rel (0) target = $region13
    $region12: #{tpu_custom_call.1} parent=1 // pred_region
      _
    $region13: #{tpu_custom_call.1} parent=1 // pred_fallthru
      _
    // Predicated region
    $region14: #{tpu_custom_call.1} parent=1 // pred_check
      _
    $region15: #{tpu_custom_call.1} parent=1 // pred_check_branch
      %30 = sbr.rel (0) target = $region17
    $region16: #{tpu_custom_call.1} parent=1 // pred_region
      _
    $region17: #{tpu_custom_call.1} parent=1 // pred_fallthru
      _
    // Predicated region
    $region18: #{tpu_custom_call.1} parent=1 // pred_check
      _
    $region19: #{tpu_custom_call.1} parent=1 // pred_check_branch
      %32 = sbr.rel (0) target = $region21
    $region20: #{tpu_custom_call.1} parent=1 // pred_region
      _
    $region21: #{tpu_custom_call.1} parent=1 // pred_fallthru
      _
    // Predicated region
    $region22: #{tpu_custom_call.1} parent=1 // pred_check
      _
    $region23: #{tpu_custom_call.1} parent=1 // pred_check_branch
      %34 = sbr.rel (0) target = $region25
    $region24: #{tpu_custom_call.1} parent=1 // pred_region
      _
    $region25: #{tpu_custom_call.1} parent=1 // pred_fallthru
      _
    // Predicated region
    $region26: #{tpu_custom_call.1} parent=1 // pred_check
      _
    $region27: #{tpu_custom_call.1} parent=1 // pred_check_branch
      %36 = sbr.rel (0) target = $region29
    $region28: #{tpu_custom_call.1} parent=1 // pred_region
      _
    $region29: #{tpu_custom_call.1} parent=1 // pred_fallthru
      _
    // Predicated region
    $region30: #{tpu_custom_call.1} parent=1 // pred_check
      _
    $region31: #{tpu_custom_call.1} parent=1 // pred_check_branch
      %38 = sbr.rel (0) target = $region33
    $region32: #{tpu_custom_call.1} parent=1 // pred_region
      %40 = dma.done [#allocation3], 128
    $region33: #{tpu_custom_call.1} parent=1 // pred_fallthru
      _
    %v41 = vld [vmem:[%s0] sm:$0xff]
    %v42 = vld [vmem:[#allocation2] sm:$0x3f]
    %v43 = vld [vmem:[%s2] sm:$0x1]
    %v45 = vperm.slane %v43, 0
    %vm47 = vcmask 48128
    %v49 = vsel %vm47, %v41, 0
    %vm51 = vcmask 1045504
    %v53 = vsel %vm51, %v42, 0
    %55 = vmatpush.msra.mxu0 0.0
    %56 = vmatpush.msra.mxu0 0.0
    %57 = vmatpush.msra.mxu0 0.0
    %58 = vmatpush.msra.mxu0 0.0
    %59 = vmatpush.msra.mxu0 0.0
    %60 = vmatpush.msra.mxu0 0.0
    %61 = vmatpush.msra.mxu0 0.0
    %62 = vmatpush.msra.mxu0 0.0
    %63 = vmatpush.msra.mxu0 0.0
    %64 = vmatpush.msra.mxu0 0.0
    %65 = vmatpush.msra.mxu0 0.0
    %66 = vmatpush.msra.mxu0 0.0
    %67 = vmatpush.msra.mxu0 0.0
    %68 = vmatpush.msra.mxu0 0.0
    %69 = vmatpush.msra.mxu0 0.0
    %70 = vmatpush.msra.mxu0 %v53
    %71 = vmatmul.f32.gmra.mxu0 %v49
    %v72 = vpop.f32.mrf.mxu0
    %v73 = vadd.f32 %v45, %v72
    %74 = vdwg.mxu0
    %v75 = vmax.f32 %v73, 0.0
    %v76 = vld [vmem:[%s3] sm:$0xff]
    %v77 = vld [vmem:[%s3 + $0x8] sm:$0xff]
    %v78 = vld [vmem:[%s3 + $0x10] sm:$0xff]
    %v79 = vld [vmem:[%s3 + $0x18] sm:$0xff]
    %v80 = vld [vmem:[%s4] sm:$0x1]
    %v82 = vperm.slane %v80, 0
    %vm84 = vcmask 261120
    %v86 = vsel %vm84, %v75, 0
    %88 = vmatpush.msra.mxu0 0.0
    %89 = vmatpush.msra.mxu0 0.0
    %90 = vmatpush.msra.mxu0 0.0
    %91 = vmatpush.msra.mxu0 0.0
    %92 = vmatpush.msra.mxu0 0.0
    %93 = vmatpush.msra.mxu0 0.0
    %94 = vmatpush.msra.mxu0 0.0
    %95 = vmatpush.msra.mxu0 0.0
    %96 = vmatpush.msra.mxu0 0.0
    %97 = vmatpush.msra.mxu0 0.0
    %98 = vmatpush.msra.mxu0 0.0
    %99 = vmatpush.msra.mxu0 0.0
    %100 = vmatpush.msra.mxu0 %v79
    %101 = vmatpush.msra.mxu0 %v78
    %102 = vmatpush.msra.mxu0 %v77
    %103 = vmatpush.msra.mxu0 %v76
    %104 = vmatmul.f32.gmra.mxu0 %v86
    %v105 = vpop.f32.mrf.mxu0
    %v106 = vadd.f32 %v82, %v105
    %107 = vdwg.mxu0
    %v108 = vmax.f32 %v106, 0.0
    %v109 = vld [vmem:[%s5] sm:$0xff]
    %v110 = vld [vmem:[%s5 + $0x8] sm:$0xff]
    %v111 = vld [vmem:[%s5 + $0x10] sm:$0xff]
    %v112 = vld [vmem:[%s5 + $0x18] sm:$0xff]
    %v113 = vld [vmem:[%s6] sm:$0x1]
    %v115 = vperm.slane %v113, 0
    %v118 = vsel %vm84, %v108, 0
    %120 = vmatpush.msra.mxu0 0.0
    %121 = vmatpush.msra.mxu0 0.0
    %122 = vmatpush.msra.mxu0 0.0
    %123 = vmatpush.msra.mxu0 0.0
    %124 = vmatpush.msra.mxu0 0.0
    %125 = vmatpush.msra.mxu0 0.0
    %126 = vmatpush.msra.mxu0 0.0
    %127 = vmatpush.msra.mxu0 0.0
    %128 = vmatpush.msra.mxu0 0.0
    %129 = vmatpush.msra.mxu0 0.0
    %130 = vmatpush.msra.mxu0 0.0
    %131 = vmatpush.msra.mxu0 0.0
    %132 = vmatpush.msra.mxu0 %v112
    %133 = vmatpush.msra.mxu0 %v111
    %134 = vmatpush.msra.mxu0 %v110
    %135 = vmatpush.msra.mxu0 %v109
    %136 = vmatmul.f32.gmra.mxu0 %v118
    %v137 = vpop.f32.mrf.mxu0
    %v138 = vadd.f32 %v115, %v137
    %139 = vdwg.mxu0
    %140 = vst.msk [vmem:[#allocation5] sm:$0xff] %vm47, %v138
    // Predicated region
    $region34: #{tpu_custom_call.1} parent=1 // pred_check
      _
    $region35: #{tpu_custom_call.1} parent=1 // pred_check_branch
      %142 = sbr.rel (0) target = $region37
    $region36: #{tpu_custom_call.1} parent=1 // pred_region
      %144 = vsyncadd [#allocation4], 0
      %s146 = sshll.u32 [#allocation5], 4
      %s147 = int_to_ptr.vmem [resolvable:$true] %s146
      %s148 = sshll.u32 %s7, 4
      %s149 = int_to_ptr.hbm [resolvable:$true] %s148
      %151 = dma.vmem_to_hbm [thread:$0]  %s147, 128, %s149, [#allocation4]
    $region37: #{tpu_custom_call.1} parent=1 // pred_fallthru
      _
    // Predicated region
    $region38: #{tpu_custom_call.1} parent=1 // pred_check
      _
    $region39: #{tpu_custom_call.1} parent=1 // pred_check_branch
      %153 = sbr.rel (0) target = $region41
    $region40: #{tpu_custom_call.1} parent=1 // pred_region
      %155 = dma.done [#allocation4], 128
    $region41: #{tpu_custom_call.1} parent=1 // pred_fallthru
      _
    %156 = vsyncpa [#allocation3], 1
    %157 = vsyncpa [#allocation4], 1

</llo_original>
